<compile_context>
chip_gen: v5e
topology: v5e:2x2
jax: 0.10.0
libtpu: 0.0.40
codegen_flags: <defaults>
</compile_context>

<pallas_src>
import numpy as np
import jax
import jax.numpy as jnp
from jax import lax
from jax.experimental import pallas as pl
from jax.experimental.pallas import tpu as pltpu

# ---------------------------------------------------------------------------
# Problem sizes (small, consistent with a Born-machine circuit)
# ---------------------------------------------------------------------------
N_QUBITS = 4                          # number of qubits
DIM = 2 ** N_QUBITS                   # Hilbert-space dimension (16)
N_LAYERS = 3                          # circuit depth
NUM_PARAM = N_LAYERS * 2 * N_QUBITS   # circuit.num_param -> len(theta_list) = 24
SHOTS = 16                            # circuit.shots
LANES = 128                           # pad the distribution axis to one vreg lane width


# ---------------------------------------------------------------------------
# Pallas kernel: pdf -> cdf (XLU roll ladder) -> inverse-CDF sampling (1 MXU op)
# ---------------------------------------------------------------------------
def q_generator_kernel(psi_ref, samp_ref, out_ref):
    # psi_ref : (2, LANES) f32   row0 = Re(psi), row1 = Im(psi), zeros beyond DIM
    # samp_ref: (LANES, N_QUBITS+1) f32  cols 0..n-1 = basis bits (zero-padded rows),
    #           col n = per-shot uniforms in rows 0..SHOTS-1
    # out_ref : (SHOTS, N_QUBITS) f32
    psi = psi_ref[...]
    psi_re = psi[0:1, :]                       # (1, LANES)
    psi_im = psi[1:2, :]

    # pdf_actual = |psi|^2 (zero beyond lane DIM-1); renormalize against fp rounding.
    pdf = psi_re * psi_re + psi_im * psi_im
    pdf = pdf / jnp.sum(pdf)

    # Inclusive prefix sum over the first DIM lanes: log2(DIM)-step XLU roll ladder.
    col = lax.broadcasted_iota(jnp.int32, (1, LANES), 1)
    cdf = pdf
    shift = 1
    while shift < DIM:                         # static Python loop -> fully unrolled
        rolled = pltpu.roll(cdf, shift=shift, axis=1)
        cdf = cdf + jnp.where(col >= shift, rolled, 0.0)
        shift *= 2

    # Exclusive prefix: shares bitwise-exact boundaries with the inclusive cdf.
    cdf_lo = jnp.where(col == 0, 0.0, pltpu.roll(cdf, shift=1, axis=1))
    # Last real bucket absorbs rounding slack so every u in [0,1) lands somewhere.
    cdf_hi = jnp.where(col == DIM - 1, jnp.float32(1.0 + 1e-6), cdf)

    # Inverse-CDF sampling: one-hot (SHOTS, LANES) selection, restricted to real buckets.
    u = samp_ref[0:SHOTS, N_QUBITS:N_QUBITS + 1]          # (SHOTS, 1)
    valid = col < DIM                                      # (1, LANES)
    sel = jnp.logical_and(jnp.logical_and(u >= cdf_lo, u < cdf_hi), valid)
    sel = sel.astype(jnp.float32)                          # (SHOTS, LANES)

    # Gather the selected basis bitstrings: single MXU matmul.
    xb = samp_ref[:, 0:N_QUBITS]                           # (LANES, N_QUBITS), zero-padded
    out_ref[...] = jnp.dot(sel, xb, preferred_element_type=jnp.float32)


# ---------------------------------------------------------------------------
# Host-side NumPy glue: fold the whole circuit into psi = U_total |0>
# (mirrors the original module's .detach().numpy() path; parameter setup only)
# ---------------------------------------------------------------------------
def _rx(t):
    c, s = np.cos(t / 2.0), np.sin(t / 2.0)
    return np.array([[c, -1j * s], [-1j * s, c]], dtype=np.complex128)


def _rz(t):
    return np.array([[np.exp(-1j * t / 2.0), 0.0],
                     [0.0, np.exp(1j * t / 2.0)]], dtype=np.complex128)


def _cnot(n, ctrl, tgt):
    D = 2 ** n
    M = np.zeros((D, D), dtype=np.complex128)
    for i in range(D):
        bits = [(i >> (n - 1 - q)) & 1 for q in range(n)]
        if bits[ctrl]:
            bits[tgt] ^= 1
        j = 0
        for q in range(n):
            j = (j << 1) | bits[q]
        M[j, i] = 1.0
    return M


def build_state_vector(theta):
    """Fold all layer unitaries on the host; return U_total |0> as complex128 (DIM,)."""
    th = np.asarray(theta, dtype=np.float64).reshape(N_LAYERS, N_QUBITS, 2)
    ent = np.eye(DIM, dtype=np.complex128)
    for q in range(N_QUBITS - 1):              # CNOT-chain entangler
        ent = _cnot(N_QUBITS, q, q + 1) @ ent
    total = np.eye(DIM, dtype=np.complex128)
    for l in range(N_LAYERS):
        rot = np.array([[1.0]], dtype=np.complex128)
        for q in range(N_QUBITS):
            rot = np.kron(rot, _rz(th[l, q, 0]) @ _rx(th[l, q, 1]))
        total = ent @ rot @ total              # apply layer l after previous layers
    return total[:, 0]                         # = U_total |0>


def make_x_basis_m_n():
    """Bitstring feature for each of the 2^n basis states -> (DIM, N_QUBITS) f32."""
    xb = np.zeros((DIM, N_QUBITS), dtype=np.float32)
    for i in range(DIM):
        for q in range(N_QUBITS):
            xb[i, q] = (i >> (N_QUBITS - 1 - q)) & 1
    return jnp.asarray(xb)


# ---------------------------------------------------------------------------
# Wrapper: Q_Generator.forward() equivalent
# ---------------------------------------------------------------------------
def q_generator_forward(theta, x_basis_m_n, uniforms):
    # TODO(synk): circuit folding is host-side NumPy (like the original
    # .detach().numpy() generate()); it is not differentiable under jit/grad.
    psi = build_state_vector(theta)

    psi2 = np.zeros((2, LANES), dtype=np.float32)          # packed input #1
    psi2[0, :DIM] = psi.real.astype(np.float32)
    psi2[1, :DIM] = psi.imag.astype(np.float32)

    samp = jnp.zeros((LANES, N_QUBITS + 1), dtype=jnp.float32)   # packed input #2
    samp = samp.at[:DIM, :N_QUBITS].set(jnp.asarray(x_basis_m_n, jnp.float32))
    samp = samp.at[:SHOTS, N_QUBITS].set(jnp.asarray(uniforms, jnp.float32).reshape(SHOTS))

    return pl.pallas_call(
        q_generator_kernel,
        out_shape=jax.ShapeDtypeStruct((SHOTS, N_QUBITS), jnp.float32),
        in_specs=[
            pl.BlockSpec(memory_space=pltpu.MemorySpace.VMEM),   # psi2 (2, 128)
            pl.BlockSpec(memory_space=pltpu.MemorySpace.VMEM),   # samp (128, 5)
        ],
        out_specs=pl.BlockSpec(memory_space=pltpu.MemorySpace.VMEM),
    )(jnp.asarray(psi2), samp)


if __name__ == "__main__":
    key = jax.random.PRNGKey(0)
    k_theta, k_u = jax.random.split(key)

    # torch.rand(num_param) * 2 * pi  (deterministic init)
    theta_list = jax.random.uniform(k_theta, (NUM_PARAM,), dtype=jnp.float32) * 2.0 * np.pi
    # uniform draws driving shot sampling (replaces np.random.choice internal state)
    uniforms = jax.random.uniform(k_u, (SHOTS,), dtype=jnp.float32)
    x_basis_m_n = make_x_basis_m_n()

    samples = q_generator_forward(theta_list, x_basis_m_n, uniforms)
    samples = jax.block_until_ready(samples)

    assert samples.shape == (SHOTS, N_QUBITS)
    assert samples.dtype == jnp.float32
    s_np = np.asarray(samples)
    assert np.all(np.isfinite(s_np))
    # every output entry must be a clean bit (also catches double-matched buckets)
    assert np.all((np.abs(s_np) < 1e-5) | (np.abs(s_np - 1.0) < 1e-5))

    # Cross-check inverse-CDF placement against a NumPy reference of the same pdf.
    psi_ref = build_state_vector(theta_list)
    re32 = psi_ref.real.astype(np.float32).astype(np.float64)
    im32 = psi_ref.imag.astype(np.float32).astype(np.float64)
    pdf_ref = re32 ** 2 + im32 ** 2
    pdf_ref = pdf_ref / pdf_ref.sum()
    cdf_ref = np.cumsum(pdf_ref)
    weights = 2 ** np.arange(N_QUBITS - 1, -1, -1, dtype=np.int64)
    idx = np.rint(s_np).astype(np.int64) @ weights
    u_np = np.asarray(uniforms, dtype=np.float64)
    lo = np.where(idx == 0, 0.0, cdf_ref[np.maximum(idx - 1, 0)])
    hi = cdf_ref[idx]
    tol = 1e-5
    assert np.all(u_np >= lo - tol) and np.all(u_np <= hi + tol)

    print("KERNEL_OK")
</pallas_src>

<mosaic_0001>
module attributes {stable_mosaic.version = 11 : i64} {
  func.func @q_generator_kernel(%arg0: memref<2x128xf32, #tpu.memory_space<vmem>>, %arg1: memref<128x5xf32, #tpu.memory_space<vmem>>, %arg2: memref<16x4xf32, #tpu.memory_space<vmem>>) attributes {dimension_semantics = [], scalar_prefetch = 0 : i64, scratch_operands = 0 : i64, tpu.core_type = #tpu.core_type<tc>} {
    %c0 = arith.constant 0 : index
    %c0_0 = arith.constant 0 : index
    %0 = vector.load %arg0[%c0, %c0_0] : memref<2x128xf32, #tpu.memory_space<vmem>>, vector<2x128xf32>
    %1 = vector.extract_strided_slice %0 {offsets = [0, 0], sizes = [1, 128], strides = [1, 1]} : vector<2x128xf32> to vector<1x128xf32>
    %2 = vector.extract_strided_slice %0 {offsets = [1, 0], sizes = [1, 128], strides = [1, 1]} : vector<2x128xf32> to vector<1x128xf32>
    %3 = arith.mulf %1, %1 : vector<1x128xf32>
    %4 = arith.mulf %2, %2 : vector<1x128xf32>
    %5 = arith.addf %3, %4 : vector<1x128xf32>
    %6 = vector.shape_cast %5 : vector<1x128xf32> to vector<1x1x128xf32>
    %cst = arith.constant dense<0.000000e+00> : vector<1xf32>
    %7 = vector.multi_reduction <add>, %6, %cst [1, 2] : vector<1x1x128xf32> to vector<1xf32>
    %8 = vector.shape_cast %7 : vector<1xf32> to vector<1x1x1xf32>
    %9 = vector.extract %8[0, 0, 0] : f32 from vector<1x1x1xf32>
    %10 = vector.broadcast %9 : f32 to vector<1x128xf32>
    %11 = arith.divf %5, %10 : vector<1x128xf32>
    %12 = tpu.iota {dimensions = array<i32: 1>} : vector<1x128xi32>
    %c1_i32 = arith.constant 1 : i32
    %13 = tpu.dynamic_rotate %11 by %c1_i32 dim 1 : vector<1x128xf32>, i32 -> vector<1x128xf32>
    %c1_i32_1 = arith.constant 1 : i32
    %14 = vector.broadcast %c1_i32_1 : i32 to vector<1x128xi32>
    %15 = arith.cmpi sge, %12, %14 : vector<1x128xi32>
    %cst_2 = arith.constant 0.000000e+00 : f32
    %16 = vector.broadcast %cst_2 : f32 to vector<1x128xf32>
    %17 = arith.select %15, %13, %16 : vector<1x128xi1>, vector<1x128xf32>
    %18 = arith.addf %11, %17 : vector<1x128xf32>
    %c2_i32 = arith.constant 2 : i32
    %19 = tpu.dynamic_rotate %18 by %c2_i32 dim 1 : vector<1x128xf32>, i32 -> vector<1x128xf32>
    %c2_i32_3 = arith.constant 2 : i32
    %20 = vector.broadcast %c2_i32_3 : i32 to vector<1x128xi32>
    %21 = arith.cmpi sge, %12, %20 : vector<1x128xi32>
    %cst_4 = arith.constant 0.000000e+00 : f32
    %22 = vector.broadcast %cst_4 : f32 to vector<1x128xf32>
    %23 = arith.select %21, %19, %22 : vector<1x128xi1>, vector<1x128xf32>
    %24 = arith.addf %18, %23 : vector<1x128xf32>
    %c4_i32 = arith.constant 4 : i32
    %25 = tpu.dynamic_rotate %24 by %c4_i32 dim 1 : vector<1x128xf32>, i32 -> vector<1x128xf32>
    %c4_i32_5 = arith.constant 4 : i32
    %26 = vector.broadcast %c4_i32_5 : i32 to vector<1x128xi32>
    %27 = arith.cmpi sge, %12, %26 : vector<1x128xi32>
    %cst_6 = arith.constant 0.000000e+00 : f32
    %28 = vector.broadcast %cst_6 : f32 to vector<1x128xf32>
    %29 = arith.select %27, %25, %28 : vector<1x128xi1>, vector<1x128xf32>
    %30 = arith.addf %24, %29 : vector<1x128xf32>
    %c8_i32 = arith.constant 8 : i32
    %31 = tpu.dynamic_rotate %30 by %c8_i32 dim 1 : vector<1x128xf32>, i32 -> vector<1x128xf32>
    %c8_i32_7 = arith.constant 8 : i32
    %32 = vector.broadcast %c8_i32_7 : i32 to vector<1x128xi32>
    %33 = arith.cmpi sge, %12, %32 : vector<1x128xi32>
    %cst_8 = arith.constant 0.000000e+00 : f32
    %34 = vector.broadcast %cst_8 : f32 to vector<1x128xf32>
    %35 = arith.select %33, %31, %34 : vector<1x128xi1>, vector<1x128xf32>
    %36 = arith.addf %30, %35 : vector<1x128xf32>
    %c0_i32 = arith.constant 0 : i32
    %37 = vector.broadcast %c0_i32 : i32 to vector<1x128xi32>
    %38 = arith.cmpi eq, %12, %37 : vector<1x128xi32>
    %c1_i32_9 = arith.constant 1 : i32
    %39 = tpu.dynamic_rotate %36 by %c1_i32_9 dim 1 : vector<1x128xf32>, i32 -> vector<1x128xf32>
    %cst_10 = arith.constant 0.000000e+00 : f32
    %40 = vector.broadcast %cst_10 : f32 to vector<1x128xf32>
    %41 = arith.select %38, %40, %39 : vector<1x128xi1>, vector<1x128xf32>
    %c15_i32 = arith.constant 15 : i32
    %42 = vector.broadcast %c15_i32 : i32 to vector<1x128xi32>
    %43 = arith.cmpi eq, %12, %42 : vector<1x128xi32>
    %cst_11 = arith.constant 1.00000095 : f32
    %44 = vector.broadcast %cst_11 : f32 to vector<1x128xf32>
    %45 = arith.select %43, %44, %36 : vector<1x128xi1>, vector<1x128xf32>
    %c0_12 = arith.constant 0 : index
    %c4 = arith.constant 4 : index
    %46 = vector.load %arg1[%c0_12, %c4] : memref<128x5xf32, #tpu.memory_space<vmem>>, vector<16x1xf32>
    %c16_i32 = arith.constant 16 : i32
    %47 = vector.broadcast %c16_i32 : i32 to vector<1x128xi32>
    %48 = arith.cmpi slt, %12, %47 : vector<1x128xi32>
    %49 = vector.broadcast %46 : vector<16x1xf32> to vector<16x128xf32>
    %50 = vector.broadcast %41 : vector<1x128xf32> to vector<16x128xf32>
    %51 = arith.cmpf oge, %49, %50 : vector<16x128xf32>
    %52 = vector.broadcast %46 : vector<16x1xf32> to vector<16x128xf32>
    %53 = vector.broadcast %45 : vector<1x128xf32> to vector<16x128xf32>
    %54 = arith.cmpf olt, %52, %53 : vector<16x128xf32>
    %55 = arith.andi %51, %54 : vector<16x128xi1>
    %56 = vector.broadcast %48 : vector<1x128xi1> to vector<16x128xi1>
    %57 = arith.andi %55, %56 : vector<16x128xi1>
    %58 = arith.extui %57 : vector<16x128xi1> to vector<16x128xi32>
    %59 = arith.sitofp %58 : vector<16x128xi32> to vector<16x128xf32>
    %c0_13 = arith.constant 0 : index
    %c0_14 = arith.constant 0 : index
    %60 = vector.load %arg1[%c0_13, %c0_14] : memref<128x5xf32, #tpu.memory_space<vmem>>, vector<128x4xf32>
    %cst_15 = arith.constant dense<0.000000e+00> : vector<16x4xf32>
    %61 = tpu.matmul %59, %60, %cst_15 {dimension_numbers = #tpu.dot_dimension_numbers<[1], [0], [0], [1], [0, 0, 1, 1], [], []>} : vector<16x128xf32>, vector<128x4xf32>, vector<16x4xf32> -> vector<16x4xf32>
    %c0_16 = arith.constant 0 : index
    %c0_17 = arith.constant 0 : index
    %62 = vector.load %arg2[%c0_16, %c0_17] : memref<16x4xf32, #tpu.memory_space<vmem>>, vector<16x4xf32>
    tpu.vector_store %arg2[%c0_16, %c0_17], %61 {strides = array<i32>} : memref<16x4xf32, #tpu.memory_space<vmem>>, vector<16x4xf32>,
    return
  }
}

</mosaic_0001>

<llo_original>
// kernel: tpu_custom_call.1
$region0: #{tpu_custom_call.1}
  #allocation0 [shape = 'u32[]', space=smem, size = 0x4, offset = 0x4, fixed_abs, tag = 'smem constant byte address 0x4 - core index']
  #allocation1 [shape = 'u32[72,128]{1,0:T(1,128)}', space=vmem, size = 0x9000, scoped, tag = 'internal scratch']
  %s0 = inlined_call_operand.vmem [shape: f32[2,128], index: 0, kind: input, shape index: {}]
  %s1 = inlined_call_operand.vmem [shape: f32[128,5], index: 1, kind: input, shape index: {}]
  %s2 = inlined_call_operand.vmem [shape: f32[16,4], index: 2, kind: output, shape index: {}]
  %s3 = sld [smem:[#allocation0]]
  $region18: #{tpu_custom_call.1} parent=0
    _
  %s5 = ssub.s32 1, %s3
  %s6 = scalar_select 0, %s5, %s3
  // Predicated region
  $region2: #{tpu_custom_call.1} parent=0 // pred_check
    _
  $region3: #{tpu_custom_call.1} parent=0 // pred_check_branch
    %8 = sbr.rel (0) target = $region5
  $region4: #{tpu_custom_call.1} parent=0 // pred_region
    _
  $region5: #{tpu_custom_call.1} parent=0 // pred_fallthru
    _
  // Predicated region
  $region6: #{tpu_custom_call.1} parent=0 // pred_check
    _
  $region7: #{tpu_custom_call.1} parent=0 // pred_check_branch
    %10 = sbr.rel (0) target = $region9
  $region8: #{tpu_custom_call.1} parent=0 // pred_region
    _
  $region9: #{tpu_custom_call.1} parent=0 // pred_fallthru
    _
  %v11 = vld [vmem:[%s0] sm:$0x3]
  %v12 = vmul.f32 %v11, %v11
  %v14 = vrot.slane %v12, 1
  %v16 = vadd.f32 %v12, %v14
  %vm17 = vcmask 1040384
  %v18 = vsel %vm17, %v16, 0.0
  %19 = vadd.xlane.f32.xlu0 %v18
  %v20 = vpop.xlane.xlu0 %19
  %v21 = vrot.slane %v20, 4
  %v22 = vadd.f32 %v20, %v21
  %v23 = vrot.slane %v22, 2
  %v24 = vadd.f32 %v22, %v23
  %v25 = vrot.slane %v24, 1
  %v26 = vadd.f32 %v24, %v25
  %s27 = vtos %v26
  %v28 = vstv %s27
  %v29 = vrcp.pop %v28
  %v30 = vmul.f32 %v28, %v29
  %v31 = vsub.f32 1.0, %v30
  %v32 = vmul.f32 %v29, %v31
  %v33 = vadd.f32 %v29, %v32
  %vm34 = vweird.f32 %v28
  %vm35 = vweird.f32 %v29
  %vm36 = vmor %vm34, %vm35
  %v37 = vsel %vm36, %v29, %v33
  %v38 = vand.u32 2147483647, %v28
  %vm39 = vcmp.eq.f32.partialorder %v38, 8.507059e+37
  %v40 = vand.u32 %v28, 2147483648
  %v41 = vor.u32 1.1754944e-38, %v40
  %v42 = vsel %vm39, %v41, %v37
  %v43 = vmul.f32 %v16, %v42
  %v44 = vlaneseq
  %v45 = vand.u32 %v44, 127
  %46 = vrot.lane.b32.xlu0 %v43, 1
  %v47 = vpop.permute.xlu0 %46
  %vm48 = vcmp.ge.s32.totalorder %v45, 1
  %v49 = vsel %vm48, %v47, 0.0
  %v50 = vadd.f32 %v43, %v49
  %51 = vrot.lane.b32.xlu0 %v50, 2
  %v52 = vpop.permute.xlu0 %51
  %vm53 = vcmp.ge.s32.totalorder %v45, 2
  %v54 = vsel %vm53, %v52, 0.0
  %v55 = vadd.f32 %v50, %v54
  %56 = vrot.lane.b32.xlu0 %v55, 4
  %v57 = vpop.permute.xlu0 %56
  %vm58 = vcmp.ge.s32.totalorder %v45, 4
  %v59 = vsel %vm58, %v57, 0.0
  %v60 = vadd.f32 %v55, %v59
  %61 = vrot.lane.b32.xlu0 %v60, 8
  %v62 = vpop.permute.xlu0 %61
  %vm63 = vcmp.ge.s32.totalorder %v45, 8
  %v64 = vsel %vm63, %v62, 0.0
  %v65 = vadd.f32 %v60, %v64
  %vm66 = vcmp.eq.s32.totalorder %v45, 0
  %67 = vrot.lane.b32.xlu0 %v65, 1
  %v68 = vpop.permute.xlu0 %67
  %v69 = vsel %vm66, 0.0, %v68
  %vm70 = vcmp.eq.s32.totalorder %v45, 15
  %v71 = vsel %vm70, 1.000001, %v65
  %v72 = vld [vmem:[%s1] sm:$0xff]
  %v73 = vld [vmem:[%s1 + $0x8] sm:$0xff]
  %vm74 = vcmp.lt.s32.totalorder %v45, 16
  %76 = vset.pattern.permute.xlu0 4
  %77 = vperm.xlu0 %76, %v72
  %v78 = vpop.permute.xlu0 %77
  %81 = vset.pattern.permute.xlu0 4
  %82 = vperm.xlu0 %81, %v73
  %v83 = vpop.permute.xlu0 %82
  %v85 = vperm.slane %v69, 0
  %vm86 = vcmp.ge.f32.partialorder %v78, %v85
  %vm87 = vcmp.ge.f32.partialorder %v83, %v85
  %v88 = vperm.slane %v71, 0
  %vm89 = vcmp.lt.f32.partialorder %v78, %v88
  %vm90 = vcmp.lt.f32.partialorder %v83, %v88
  %vm91 = vmand %vm86, %vm89
  %vm92 = vmand %vm87, %vm90
  %v93 = vsel %vm74, 1, 0
  %vm94 = vcmp.eq.s32.totalorder %v93, 1
  %vm95 = vmand %vm91, %vm94
  %vm96 = vmand %vm92, %vm94
  %v97 = vsel %vm95, 1, 0
  %v98 = vsel %vm96, 1, 0
  %v99 = vcvt.s32.f32 %v97
  %v100 = vcvt.s32.f32 %v98
  %v101 = vld [vmem:[%s1] sm:$0xff]
  %v102 = vld [vmem:[%s1 + $0x8] sm:$0xff]
  %v103 = vld [vmem:[%s1 + $0x10] sm:$0xff]
  %v104 = vld [vmem:[%s1 + $0x18] sm:$0xff]
  %v105 = vld [vmem:[%s1 + $0x20] sm:$0xff]
  %v106 = vld [vmem:[%s1 + $0x28] sm:$0xff]
  %v107 = vld [vmem:[%s1 + $0x30] sm:$0xff]
  %v108 = vld [vmem:[%s1 + $0x38] sm:$0xff]
  %v109 = vld [vmem:[%s1 + $0x40] sm:$0xff]
  %v110 = vld [vmem:[%s1 + $0x48] sm:$0xff]
  %v111 = vld [vmem:[%s1 + $0x50] sm:$0xff]
  %v112 = vld [vmem:[%s1 + $0x58] sm:$0xff]
  %v113 = vld [vmem:[%s1 + $0x60] sm:$0xff]
  %v114 = vld [vmem:[%s1 + $0x68] sm:$0xff]
  %v115 = vld [vmem:[%s1 + $0x70] sm:$0xff]
  %v116 = vld [vmem:[%s1 + $0x78] sm:$0xff]
  %117 = vmatpush.msra.mxu0 %v116
  %118 = vmatpush.msra.mxu0 %v115
  %119 = vmatpush.msra.mxu0 %v114
  %120 = vmatpush.msra.mxu0 %v113
  %121 = vmatpush.msra.mxu0 %v112
  %122 = vmatpush.msra.mxu0 %v111
  %123 = vmatpush.msra.mxu0 %v110
  %124 = vmatpush.msra.mxu0 %v109
  %125 = vmatpush.msra.mxu0 %v108
  %126 = vmatpush.msra.mxu0 %v107
  %127 = vmatpush.msra.mxu0 %v106
  %128 = vmatpush.msra.mxu0 %v105
  %129 = vmatpush.msra.mxu0 %v104
  %130 = vmatpush.msra.mxu0 %v103
  %131 = vmatpush.msra.mxu0 %v102
  %132 = vmatpush.msra.mxu0 %v101
  %133 = vmatmul.f32.gmra.mxu0 %v99
  %v134 = vpop.f32.mrf.mxu0
  %v135 = vadd.f32 0.0, %v134
  %136 = vmatmul.f32.gmra.mxu0 %v100
  %v137 = vpop.f32.mrf.mxu0
  %v138 = vadd.f32 0.0, %v137
  %139 = vdwg.mxu0
  %vm140 = vcmask 31744
  %141 = vst.msk [vmem:[%s2] sm:$0xff] %vm140, %v135
  %142 = vst.msk [vmem:[%s2 + $0x8] sm:$0xff] %vm140, %v138
  // Predicated region
  $region10: #{tpu_custom_call.1} parent=0 // pred_check
    _
  $region11: #{tpu_custom_call.1} parent=0 // pred_check_branch
    %144 = sbr.rel (0) target = $region13
  $region12: #{tpu_custom_call.1} parent=0 // pred_region
    _
  $region13: #{tpu_custom_call.1} parent=0 // pred_fallthru
    _
  // Predicated region
  $region14: #{tpu_custom_call.1} parent=0 // pred_check
    _
  $region15: #{tpu_custom_call.1} parent=0 // pred_check_branch
    %146 = sbr.rel (0) target = $region17
  $region16: #{tpu_custom_call.1} parent=0 // pred_region
    _
  $region17: #{tpu_custom_call.1} parent=0 // pred_fallthru
    _

</llo_original>
